<compile_context>
chip_gen: v5e
topology: v5e:2x2
jax: 0.10.0
libtpu: 0.0.40
codegen_flags: <defaults>
</compile_context>

<pallas_src>
import functools

import jax
import jax.numpy as jnp
from jax.experimental import pallas as pl
from jax.experimental.pallas import tpu as pltpu

_LANE = 128
_MIB = 1024 * 1024


# --------------------------------------------------------------------------
# helpers
# --------------------------------------------------------------------------
def _pow_static(x, p):
    """x ** p for a static Python exponent; VPU multiplies for small integer p.

    x is strictly positive (already clamped to eps)."""
    if float(p) == int(p) and 1 <= int(p) <= 16:
        n = int(p)
        result = None
        base = x
        while n > 0:
            if n & 1:
                result = base if result is None else result * base
            n >>= 1
            if n:
                base = base * base
        return result
    # Non-integer static exponent: constant-folded EUP exp/log.
    return jnp.exp(jnp.log(x) * float(p))


def _sublane(itemsize):
    # dtype-aware packed min-tile along the sublane axis
    return {4: 8, 2: 16, 1: 32}.get(itemsize, 8)


def _device_budget():
    """Per-buffer input budget, vmem_limit, and whether to split for 2 TCs."""
    kind = ""
    try:
        kind = jax.devices()[0].device_kind.lower()
    except Exception:
        pass
    if "v7" in kind:
        # v7x: 3.2 TB/s HBM -> bigger tiles amortize per-grid-step overhead;
        # 64 MiB physical VMEM -> keep >=16 MiB headroom.
        return 5 * _MIB, 48 * _MIB, True
    # v5e/v6e: 2 MiB tiles already hide DMA under EUP/VPU work.
    return 2 * _MIB, 32 * _MIB, False


def _choose_row_tiles(rows, hw, itemsize, budget, multi_core):
    sub = _sublane(itemsize)
    max_hw_tile = 2048                              # multiple of 128
    tile_hw = hw if hw <= max_hw_tile else max_hw_tile
    hw_pad = -(-tile_hw // _LANE) * _LANE           # lane-padded footprint
    tile_r = budget // (hw_pad * itemsize)
    tile_r = max(sub, min(1024, (tile_r // sub) * sub))
    if multi_core and rows > sub:
        # Ensure >=2 blocks on the "parallel" rows axis so both v7x TCs work.
        half = (-(-rows // 2) + sub - 1) // sub * sub
        tile_r = min(tile_r, half)
    if tile_r >= rows:
        tile_r = rows                               # full dim is always legal
    return tile_r, tile_hw


def _choose_cl_tiles(n, hw, c, itemsize, budget, multi_core):
    per_batch = hw * c * itemsize
    tile_n = max(1, budget // per_batch)
    if multi_core and n >= 2:
        tile_n = min(tile_n, -(-n // 2))            # >=2 batch blocks for 2 TCs
    return min(tile_n, n)


def _cost(elems, rows_out, itemsize, p_static):
    if p_static is not None and float(p_static) == int(p_static):
        flops = 5 * elems                           # clamp + pow-muls + add
        transc = 2 * rows_out                       # per-row log+exp only
    else:
        flops = 3 * elems
        transc = 2 * elems + 2 * rows_out           # per-elem log+exp
    return pl.CostEstimate(
        flops=flops,
        transcendentals=transc,
        bytes_accessed=elems * itemsize + rows_out * itemsize + 4,
    )


# --------------------------------------------------------------------------
# kernels
# --------------------------------------------------------------------------
def _gem_rows_kernel(*refs, eps, hw, tile_hw, lane_dense, p_static):
    # refs: ([p_ref], x_ref, o_ref, acc_ref)
    #   x_ref:   (TILE_R, TILE_HW) VMEM tile
    #   o_ref:   (TILE_R, 1) output (resident across the k axis)
    #   acc_ref: (TILE_R, 128) f32 if lane_dense else (TILE_R, 1)
    if p_static is None:
        p_ref, x_ref, o_ref, acc_ref = refs
        p = p_ref[0]
        pow_fn = lambda v: jnp.exp(p * jnp.log(v))
        inv_pow_fn = lambda m: jnp.exp(jnp.log(m) / p)
    else:
        x_ref, o_ref, acc_ref = refs
        pow_fn = lambda v: _pow_static(v, p_static)
        inv_pow_fn = lambda m: jnp.exp(jnp.log(m) * (1.0 / float(p_static)))

    k = pl.program_id(1)
    last_k = k == pl.num_programs(1) - 1

    @pl.when(k == 0)
    def _():
        acc_ref[...] = jnp.zeros_like(acc_ref)

    x = x_ref[...].astype(jnp.float32)
    xp = pow_fn(jnp.maximum(x, eps))                # clamp -> strictly positive

    def accumulate(vals):
        if lane_dense:
            # Fold lane groups with VPU adds; keep the accumulator lane-dense.
            part = vals[:, 0:_LANE]
            for g in range(1, tile_hw // _LANE):
                part = part + vals[:, g * _LANE:(g + 1) * _LANE]
            acc_ref[...] += part
        else:
            acc_ref[...] += jnp.sum(vals, axis=-1, keepdims=True)

    if hw % tile_hw != 0:
        # Padded tail exists only on the final spatial step: keep the mask off
        # the steady-state path.
        @pl.when(jnp.logical_not(last_k))
        def _():
            accumulate(xp)

        @pl.when(last_k)
        def _():
            col = jax.lax.broadcasted_iota(jnp.int32, xp.shape, 1) + k * tile_hw
            accumulate(jnp.where(col < hw, xp, 0.0))
    else:
        accumulate(xp)

    @pl.when(last_k)
    def _():
        acc = acc_ref[...]
        if lane_dense:
            acc = jnp.sum(acc, axis=-1, keepdims=True)   # single XLU reduce
        m = acc * (1.0 / hw)                             # full-spatial average
        o_ref[...] = inv_pow_fn(m).astype(o_ref.dtype)   # m ** (1/p), m > 0


def _gem_cl_kernel(*refs, eps, hw, p_static):
    # Channels-on-lanes: x_ref (TILE_N, HW, C), o_ref (TILE_N, 1, C).
    if p_static is None:
        p_ref, x_ref, o_ref = refs
        p = p_ref[0]
        pow_fn = lambda v: jnp.exp(p * jnp.log(v))
        inv_pow_fn = lambda m: jnp.exp(jnp.log(m) / p)
    else:
        x_ref, o_ref = refs
        pow_fn = lambda v: _pow_static(v, p_static)
        inv_pow_fn = lambda m: jnp.exp(jnp.log(m) * (1.0 / float(p_static)))

    x = x_ref[...].astype(jnp.float32)
    xp = pow_fn(jnp.maximum(x, eps))
    s = jnp.sum(xp, axis=1, keepdims=True)          # (TILE_N, 1, C) sublane reduce
    m = s * (1.0 / hw)
    o_ref[...] = inv_pow_fn(m).astype(o_ref.dtype)  # lane-dense store


# --------------------------------------------------------------------------
# wrapper
# --------------------------------------------------------------------------
def gem_pallas(x, p, eps=1e-6):
    """x: (N, C, H, W).  p: Python number (static fast path) or (1,) f32 array
    (learnable Parameter, traced path).  Returns (N, C, 1, 1)."""
    N, C, H, W = x.shape
    HW = H * W
    itemsize = jnp.dtype(x.dtype).itemsize
    budget, vmem_limit, multi_core = _device_budget()

    p_static = float(p) if isinstance(p, (int, float)) else None
    p_args = () if p_static is not None else (jnp.asarray(p, jnp.float32).reshape(1),)

    if HW < _LANE and C >= _LANE:
        # ---- channels-on-lanes path (e.g. 7x7 maps): C on lanes, reduce HW ----
        # TODO(synk): fuse with a producer that emits NHWC to drop this transpose.
        x_t = jnp.transpose(x, (0, 2, 3, 1)).reshape(N, HW, C)
        tile_n = _choose_cl_tiles(N, HW, C, itemsize, budget, multi_core)
        grid = (pl.cdiv(N, tile_n),)

        in_specs = [pl.BlockSpec((tile_n, HW, C), lambda i: (i, 0, 0))]
        if p_static is None:
            in_specs = [pl.BlockSpec(memory_space=pltpu.MemorySpace.SMEM)] + in_specs

        out = pl.pallas_call(
            functools.partial(_gem_cl_kernel, eps=eps, hw=HW, p_static=p_static),
            out_shape=jax.ShapeDtypeStruct((N, 1, C), x.dtype),
            grid_spec=pltpu.PrefetchScalarGridSpec(
                num_scalar_prefetch=0,
                grid=grid,
                in_specs=in_specs,
                out_specs=pl.BlockSpec((tile_n, 1, C), lambda i: (i, 0, 0)),
            ),
            compiler_params=pltpu.CompilerParams(
                dimension_semantics=("parallel",),
                vmem_limit_bytes=vmem_limit,
            ),
            cost_estimate=_cost(N * C * HW, N * C, itemsize, p_static),
        )(*p_args, x_t)
        return out.reshape(N, C, 1, 1)

    # ---- default path: rows = N*C on sublanes, spatial reduction on lanes ----
    R = N * C
    x2 = x.reshape(R, HW)
    tile_r, tile_hw = _choose_row_tiles(R, HW, itemsize, budget, multi_core)
    lane_dense = (tile_hw % _LANE == 0)
    acc_cols = _LANE if lane_dense else 1
    grid = (pl.cdiv(R, tile_r), pl.cdiv(HW, tile_hw))

    in_specs = [pl.BlockSpec((tile_r, tile_hw), lambda i, k: (i, k))]
    if p_static is None:
        in_specs = [pl.BlockSpec(memory_space=pltpu.MemorySpace.SMEM)] + in_specs

    out = pl.pallas_call(
        functools.partial(_gem_rows_kernel, eps=eps, hw=HW, tile_hw=tile_hw,
                          lane_dense=lane_dense, p_static=p_static),
        out_shape=jax.ShapeDtypeStruct((R, 1), x.dtype),
        grid_spec=pltpu.PrefetchScalarGridSpec(
            num_scalar_prefetch=0,
            grid=grid,
            in_specs=in_specs,
            out_specs=pl.BlockSpec((tile_r, 1), lambda i, k: (i, 0)),
            scratch_shapes=[pltpu.VMEM((tile_r, acc_cols), jnp.float32)],
        ),
        compiler_params=pltpu.CompilerParams(
            dimension_semantics=("parallel", "arbitrary"),
            vmem_limit_bytes=vmem_limit,
        ),
        cost_estimate=_cost(R * HW, R, itemsize, p_static),
    )(*p_args, x2)
    return out.reshape(N, C, 1, 1)


def gem_ref(x, p, eps=1e-6):
    """Pure-JAX reference mirroring the PyTorch gem()."""
    p_val = float(p) if isinstance(p, (int, float)) else p[0]
    xc = jnp.maximum(x.astype(jnp.float32), eps)
    pooled = jnp.mean(xc ** p_val, axis=(-2, -1), keepdims=True)
    return (pooled ** (1.0 / p_val)).astype(x.dtype)


if __name__ == "__main__":
    key = jax.random.PRNGKey(0)
    k1, k2, k3 = jax.random.split(key, 3)

    # 1) Spec shape, static p=3 (torch default) -> VPU-multiply fast path.
    x1 = jax.random.normal(k1, (2, 4, 16, 16), dtype=jnp.float32)
    y1 = gem_pallas(x1, 3.0)
    jax.block_until_ready(y1)
    assert y1.shape == (2, 4, 1, 1), y1.shape
    assert jnp.allclose(y1, gem_ref(x1, 3.0), rtol=1e-4, atol=1e-4)

    # 2) Traced learnable p (GeM's Parameter) -> SMEM scalar + exp/log path.
    p = jnp.ones((1,), dtype=jnp.float32) * 3.0
    y2 = gem_pallas(x1, p)
    jax.block_until_ready(y2)
    assert jnp.allclose(y2, gem_ref(x1, p), rtol=1e-4, atol=1e-4)

    # 3) Canonical GeM case: 7x7 map, many channels -> channels-on-lanes path.
    x3 = jax.random.normal(k2, (2, 256, 7, 7), dtype=jnp.float32)
    y3 = gem_pallas(x3, 3.0)
    jax.block_until_ready(y3)
    assert y3.shape == (2, 256, 1, 1), y3.shape
    assert jnp.allclose(y3, gem_ref(x3, 3.0), rtol=1e-4, atol=1e-4)

    # 4) HW > spatial tile: multi-step reduction + masked partial tail.
    x4 = jax.random.normal(k3, (1, 8, 48, 48), dtype=jnp.float32)
    y4 = gem_pallas(x4, 3.0)
    jax.block_until_ready(y4)
    assert jnp.allclose(y4, gem_ref(x4, 3.0), rtol=1e-4, atol=1e-4)

    print("KERNEL_OK")
</pallas_src>

<mosaic_0001>
module attributes {stable_mosaic.version = 11 : i64} {
  func.func @_gem_rows_kernel(%arg0: i32, %arg1: i32, %arg2: memref<8x256xf32, #tpu.memory_space<vmem>>, %arg3: memref<8x1xf32, #tpu.memory_space<vmem>>, %arg4: memref<8x128xf32, #tpu.memory_space<vmem>>) attributes {dimension_semantics = [#tpu.dimension_semantics<parallel>, #tpu.dimension_semantics<arbitrary>], iteration_bounds = array<i64: 1, 1>, scalar_prefetch = 0 : i64, scratch_operands = 1 : i64, tpu.core_type = #tpu.core_type<tc>, window_params = [{transform_indices = @transform_0, window_bounds = array<i64: 8, 256>}, {transform_indices = @transform_1, window_bounds = array<i64: 8, 1>}]} {
    %c0_i32 = arith.constant 0 : i32
    %0 = arith.cmpi eq, %arg1, %c0_i32 : i32
    %c0_i32_0 = arith.constant 0 : i32
    %1 = arith.cmpi eq, %arg1, %c0_i32_0 : i32
    %2 = arith.extui %1 : i1 to i32
    %c0_i32_1 = arith.constant 0 : i32
    %3 = arith.cmpi ne, %2, %c0_i32_1 : i32
    scf.if %3 {
      %cst_8 = arith.constant 0.000000e+00 : f32
      %17 = vector.broadcast %cst_8 : f32 to vector<8x128xf32>
      %c0_9 = arith.constant 0 : index
      %c0_10 = arith.constant 0 : index
      %18 = vector.load %arg4[%c0_9, %c0_10] : memref<8x128xf32, #tpu.memory_space<vmem>>, vector<8x128xf32>
      tpu.vector_store %arg4[%c0_9, %c0_10], %17 {strides = array<i32>} : memref<8x128xf32, #tpu.memory_space<vmem>>, vector<8x128xf32>,
    } else {
    }
    %c0 = arith.constant 0 : index
    %c0_2 = arith.constant 0 : index
    %4 = vector.load %arg2[%c0, %c0_2] : memref<8x256xf32, #tpu.memory_space<vmem>>, vector<8x256xf32>
    %cst = arith.constant 9.99999997E-7 : f32
    %5 = vector.broadcast %cst : f32 to vector<8x256xf32>
    %6 = arith.maximumf %4, %5 : vector<8x256xf32>
    %7 = arith.mulf %6, %6 : vector<8x256xf32>
    %8 = arith.mulf %6, %7 : vector<8x256xf32>
    %9 = vector.extract_strided_slice %8 {offsets = [0, 0], sizes = [8, 128], strides = [1, 1]} : vector<8x256xf32> to vector<8x128xf32>
    %10 = vector.extract_strided_slice %8 {offsets = [0, 128], sizes = [8, 128], strides = [1, 1]} : vector<8x256xf32> to vector<8x128xf32>
    %11 = arith.addf %9, %10 : vector<8x128xf32>
    %c0_3 = arith.constant 0 : index
    %c0_4 = arith.constant 0 : index
    %12 = vector.load %arg4[%c0_3, %c0_4] : memref<8x128xf32, #tpu.memory_space<vmem>>, vector<8x128xf32>
    %13 = arith.addf %12, %11 : vector<8x128xf32>
    %c0_5 = arith.constant 0 : index
    %c0_6 = arith.constant 0 : index
    %14 = vector.load %arg4[%c0_5, %c0_6] : memref<8x128xf32, #tpu.memory_space<vmem>>, vector<8x128xf32>
    tpu.vector_store %arg4[%c0_5, %c0_6], %13 {strides = array<i32>} : memref<8x128xf32, #tpu.memory_space<vmem>>, vector<8x128xf32>,
    %15 = arith.extui %0 : i1 to i32
    %c0_i32_7 = arith.constant 0 : i32
    %16 = arith.cmpi ne, %15, %c0_i32_7 : i32
    scf.if %16 {
      %c0_8 = arith.constant 0 : index
      %c0_9 = arith.constant 0 : index
      %17 = vector.load %arg4[%c0_8, %c0_9] : memref<8x128xf32, #tpu.memory_space<vmem>>, vector<8x128xf32>
      %cst_10 = arith.constant dense<0.000000e+00> : vector<8xf32>
      %18 = vector.multi_reduction <add>, %17, %cst_10 [1] : vector<8x128xf32> to vector<8xf32>
      %19 = vector.shape_cast %18 : vector<8xf32> to vector<8x1xf32>
      %cst_11 = arith.constant 3.906250e-03 : f32
      %20 = vector.broadcast %cst_11 : f32 to vector<8x1xf32>
      %21 = arith.mulf %19, %20 : vector<8x1xf32>
      %22 = math.log %21 : vector<8x1xf32>
      %cst_12 = arith.constant 0.333333343 : f32
      %23 = vector.broadcast %cst_12 : f32 to vector<8x1xf32>
      %24 = arith.mulf %22, %23 : vector<8x1xf32>
      %25 = math.exp %24 : vector<8x1xf32>
      %c0_13 = arith.constant 0 : index
      %c0_14 = arith.constant 0 : index
      %26 = vector.load %arg3[%c0_13, %c0_14] : memref<8x1xf32, #tpu.memory_space<vmem>>, vector<8x1xf32>
      tpu.vector_store %arg3[%c0_13, %c0_14], %25 {strides = array<i32>} : memref<8x1xf32, #tpu.memory_space<vmem>>, vector<8x1xf32>,
    } else {
    }
    return
  }
  func.func @transform_0(%arg0: i32, %arg1: i32) -> (i32, i32) {
    %c0_i32 = arith.constant 0 : i32
    return %arg0, %arg1 : i32, i32
  }
  func.func @transform_1(%arg0: i32, %arg1: i32) -> (i32, i32) {
    %c0_i32 = arith.constant 0 : i32
    %c0_i32_0 = arith.constant 0 : i32
    return %arg0, %c0_i32 : i32, i32
  }
}

</mosaic_0001>

<llo_original>
// kernel: tpu_custom_call.1
$region0: #{tpu_custom_call.1}
  #allocation0 [shape = 'u32[]', space=smem, size = 0x4, offset = 0x4, fixed_abs, tag = 'smem constant byte address 0x4 - core index']
  #allocation1 [shape = 'u32[72,128]{1,0:T(1,128)}', space=vmem, size = 0x9000, scoped, tag = 'internal scratch']
  #allocation2 [shape = 'f32[8,128]{1,0:T(8,128)}', space=vmem, size = 0x1000, scoped, tag = 'scratch operand']
  %s0 = inlined_call_operand.hbm [shape: f32[8,256], index: 0, kind: input, shape index: {}]
  %s1 = inlined_call_operand.vmem [shape: f32[8,1], index: 1, kind: output, shape index: {}]
  %s2 = sld [smem:[#allocation0]]
  $region26: #{tpu_custom_call.1} parent=0
    _
  %s4 = ssub.s32 1, %s2
  %s5 = scalar_select 0, %s4, %s2
  $region1: #{tpu_custom_call.1} parent=0
    #allocation3 [shape = 'u8[8192]{0}', space=vmem, size = 0x2000, scoped, tag = 'input window, operand 0, single buffered']
    #allocation4 [shape = 's32[1]{0}', space=sflag, size = 0x4, scoped, tag = 'scoped memory for tpu_custom_call.1']
    %6 = vsyncpa [#allocation4], 0
    // Predicated region
    $region2: #{tpu_custom_call.1} parent=1 // pred_check
      _
    $region3: #{tpu_custom_call.1} parent=1 // pred_check_branch
      %8 = sbr.rel (0) target = $region5
    $region4: #{tpu_custom_call.1} parent=1 // pred_region
      %10 = vsyncadd [#allocation4], 0
      %s12 = sshll.u32 %s0, 4
      %s13 = int_to_ptr.hbm [resolvable:$true] %s12
      %s14 = sshll.u32 [#allocation3], 4
      %s15 = int_to_ptr.vmem [resolvable:$true] %s14
      %17 = dma.hbm_to_vmem [thread:$0]  %s13, 256, %s15, [#allocation4]
    $region5: #{tpu_custom_call.1} parent=1 // pred_fallthru
      _
    // Predicated region
    $region6: #{tpu_custom_call.1} parent=1 // pred_check
      _
    $region7: #{tpu_custom_call.1} parent=1 // pred_check_branch
      %19 = sbr.rel (0) target = $region9
    $region8: #{tpu_custom_call.1} parent=1 // pred_region
      %21 = dma.done [#allocation4], 256
    $region9: #{tpu_custom_call.1} parent=1 // pred_fallthru
      _
    %p22 = scmp.eq.s32.totalorder 0, 0
    // Predicated region
    $region10: #{tpu_custom_call.1} parent=1 // pred_check
      %p23 = pneg %p22
    $region11: #{tpu_custom_call.1} parent=1 // pred_check_branch
      %25 = sbr.rel (%p23) target = $region13
    $region12: #{tpu_custom_call.1} parent=1 // pred_region
      %26 = vst [vmem:[#allocation2] sm:$0xff] 0.0
    $region13: #{tpu_custom_call.1} parent=1 // pred_fallthru
      _
    %v27 = vld [vmem:[#allocation3] sm:$0xff]
    %v28 = vld [vmem:[#allocation3 + $0x8] sm:$0xff]
    %v29 = vmax.f32 %v27, 1e-06
    %v30 = vmax.f32 %v28, 1e-06
    %v31 = vmul.f32 %v29, %v29
    %v32 = vmul.f32 %v30, %v30
    %v33 = vmul.f32 %v29, %v31
    %v34 = vmul.f32 %v30, %v32
    %v35 = vadd.f32 %v33, %v34
    %v36 = vld [vmem:[#allocation2] sm:$0xff]
    %v37 = vadd.f32 %v36, %v35
    %38 = vst [vmem:[#allocation2] sm:$0xff] %v37
    // Predicated region
    $region14: #{tpu_custom_call.1} parent=1 // pred_check
      %p39 = pneg %p22
    $region15: #{tpu_custom_call.1} parent=1 // pred_check_branch
      %41 = sbr.rel (%p39) target = $region17
    $region16: #{tpu_custom_call.1} parent=1 // pred_region
      %v42 = vld [vmem:[#allocation2] sm:$0xff]
      %43 = vadd.xlane.f32.xlu0 %v42
      %v44 = vpop.xlane.xlu0 %43
      %v45 = vmul.f32 %v44, 0.00390625
      %v46 = vlog2.pop %v45
      %v47 = vmul.f32 %v46, 0.6931472
      %v48 = vmul.f32 %v47, 0.33333334
      %v49 = vmul.f32 %v48, 1.442695
      %v50 = vpow.pop %v49
      %vm51 = vcmask 7168
      %52 = vst.msk [vmem:[%s1] sm:$0xff] %vm51, %v50
    $region17: #{tpu_custom_call.1} parent=1 // pred_fallthru
      _
    // Predicated region
    $region18: #{tpu_custom_call.1} parent=1 // pred_check
      _
    $region19: #{tpu_custom_call.1} parent=1 // pred_check_branch
      %54 = sbr.rel (0) target = $region21
    $region20: #{tpu_custom_call.1} parent=1 // pred_region
      _
    $region21: #{tpu_custom_call.1} parent=1 // pred_fallthru
      _
    // Predicated region
    $region22: #{tpu_custom_call.1} parent=1 // pred_check
      _
    $region23: #{tpu_custom_call.1} parent=1 // pred_check_branch
      %56 = sbr.rel (0) target = $region25
    $region24: #{tpu_custom_call.1} parent=1 // pred_region
      _
    $region25: #{tpu_custom_call.1} parent=1 // pred_fallthru
      _
    %57 = vsyncpa [#allocation4], 1

</llo_original>
